<compile_context>
chip_gen: v7x
topology: tpu7x:2x2x1
jax: 0.10.0
libtpu: 0.0.40
codegen_flags: <defaults>
</compile_context>

<pallas_src>
import functools

import jax
import jax.numpy as jnp
from jax.experimental import pallas as pl
from jax.experimental.pallas import tpu as pltpu

_ROW_ALIGN = 16  # valid sublane multiple for both f32 (8) and bf16 (16) tiles
_MIB = 1024 * 1024


def _cdiv(a, b):
    return -(-a // b)


def _round_up(x, m):
    return _cdiv(x, m) * m


# --------------------------------------------------------------------------- kernel


def _entity_encoder_kernel(x_ref, w1_ref, b1_ref, w2_ref, b2_ref, o_ref):
    """Fused 2-layer MLP: relu(relu(x @ W1 + b1) @ W2 + b2).

    Matmuls run in the *weight* dtype (bf16 or f32) with f32 accumulation; the
    observation tile is cast in-kernel.  Bias add + ReLU are done in f32 and the
    result is cast once to the output dtype.
    """
    x = x_ref[...].astype(w1_ref.dtype)
    # fc1 + ReLU (MXU matmul, f32 accumulate)
    h1 = jnp.dot(x, w1_ref[...], preferred_element_type=jnp.float32)
    h1 = jnp.maximum(h1 + b1_ref[...], 0.0)  # b1 is (1, hidden) -> broadcasts
    # fc2 + ReLU (cast h1 back to the matmul dtype so the MXU stays in bf16)
    h2 = jnp.dot(h1.astype(w2_ref.dtype), w2_ref[...],
                 preferred_element_type=jnp.float32)
    h2 = jnp.maximum(h2 + b2_ref[...], 0.0)
    o_ref[...] = h2.astype(o_ref.dtype)


# ------------------------------------------------------------------ sizing heuristics


@functools.lru_cache(maxsize=1)
def _tpu_generation():
    """(tensorcores_per_chip, per-core VMEM bytes), with safe fallbacks."""
    vmem_bytes = 64 * _MIB  # conservative default == smallest per-TC VMEM (v7x)
    num_tc = 1
    try:
        vmem_bytes = int(pltpu.get_tpu_info().vmem_capacity_bytes)
    except Exception:
        pass
    try:
        kind = jax.devices()[0].device_kind.lower()
        if "v7" in kind or "7x" in kind:
            num_tc = 2  # v7x: 2 TensorCores/chip share the "parallel" grid axis
    except Exception:
        pass
    return num_tc, vmem_bytes


def _vmem_budgets(vmem_capacity_bytes):
    """Per-step working-set budget and scoped vmem limit for this generation."""
    # ~40 MiB budget / 48 MiB limit on 64 MiB parts (v7x);
    # ~80 MiB budget / 96 MiB limit on 128 MiB parts (v5e/v6e).
    budget = min((vmem_capacity_bytes * 5) // 8, 96 * _MIB)
    limit = min((vmem_capacity_bytes * 3) // 4, 112 * _MIB)
    return budget, limit


def _pick_block_rows(requested, n, in_f, hidden, act_bytes, out_bytes, mm_bytes,
                     vmem_budget_bytes, min_steps=1):
    """Balanced row tile: largest tile that fits VMEM, then even-ish split of n."""
    n_eff = _round_up(max(n, 1), _ROW_ALIGN)

    def step_bytes(bm):
        x_buf = 2 * bm * in_f * act_bytes                # double-buffered input tile
        o_buf = 2 * bm * hidden * out_bytes              # double-buffered output tile
        h_tmp = 2 * bm * hidden * 4                      # f32 intermediates (h1, h2)
        h_cast = bm * hidden * mm_bytes                  # bf16 copy of h1 for fc2
        w_buf = 2 * (in_f * hidden + hidden * hidden) * mm_bytes  # resident weights
        b_buf = 2 * 2 * hidden * 4                       # resident biases
        return x_buf + o_buf + h_tmp + h_cast + w_buf + b_buf

    # 1) Largest row count the VMEM budget allows (halving search from `requested`).
    bm_cap = _round_up(max(min(requested, n_eff), _ROW_ALIGN), _ROW_ALIGN)
    while bm_cap > _ROW_ALIGN and step_bytes(bm_cap) > vmem_budget_bytes:
        bm_cap = max(_ROW_ALIGN, _round_up(bm_cap // 2, _ROW_ALIGN))

    # 2) Balance: split n over the minimum number of steps compatible with that cap
    #    (and the per-generation minimum step count), so last-tile waste stays small.
    steps = max(min_steps, _cdiv(n_eff, bm_cap))
    steps = min(steps, _cdiv(n_eff, _ROW_ALIGN))  # never below 16 rows per step
    bm = min(bm_cap, _round_up(_cdiv(n_eff, steps), _ROW_ALIGN))
    return bm


# ------------------------------------------------------------------------- forward


def entity_encoder_forward(observation, w1, b1, w2, b2, *,
                           block_rows=1024,
                           out_dtype=None,
                           vmem_limit_bytes=None,
                           single_buffer_weights=True):
    """Pallas-backed forward pass matching EntityEncoder.forward.

    observation: (entity_dim,) or (num_obs, entity_dim).
    w1: (entity_dim, hidden), w2: (hidden, hidden)  -- pre-transposed, already in the
        desired MXU dtype (use prepare_entity_encoder_params ONCE at init time).
    b1, b2: (hidden,) or (1, hidden) float32.
    out_dtype: output dtype (defaults to the observation dtype; pass jnp.bfloat16 to
        halve output DMA when the consumer accepts bf16).
    Returns (num_obs, hidden); a 1-D input returns (1, hidden), as in PyTorch.
    """
    if observation.ndim == 1:
        observation = observation.reshape(1, -1)

    n, in_features = observation.shape
    hidden = w1.shape[1]
    if out_dtype is None:
        out_dtype = observation.dtype
    if b1.ndim == 1:
        b1 = b1.reshape(1, -1)
    if b2.ndim == 1:
        b2 = b2.reshape(1, -1)

    num_tc, vmem_cap = _tpu_generation()
    budget, auto_limit = _vmem_budgets(vmem_cap)
    if vmem_limit_bytes is None:
        vmem_limit_bytes = auto_limit

    act_bytes = jnp.dtype(observation.dtype).itemsize
    out_bytes = jnp.dtype(out_dtype).itemsize
    mm_bytes = jnp.dtype(w1.dtype).itemsize

    # On multi-TC chips (v7x) make sure the "parallel" grid has work for every core.
    min_steps = 1
    if num_tc > 1 and n > _ROW_ALIGN:
        min_steps = min(2 * num_tc, _cdiv(n, _ROW_ALIGN))

    bm = _pick_block_rows(block_rows, n, in_features, hidden,
                          act_bytes, out_bytes, mm_bytes, budget, min_steps)

    # Balanced tiles keep this padding to a handful of rows (vs. up to a full block).
    n_pad = _cdiv(n, bm) * bm
    if n_pad != n:
        observation = jnp.pad(observation, ((0, n_pad - n), (0, 0)))

    grid = (n_pad // bm,)

    def build_call(use_single_buffer):
        const_kwargs = {}
        if use_single_buffer:
            # Constant index_map -> the block never changes; one pipeline buffer is
            # enough, halving the weights' VMEM footprint.
            const_kwargs = dict(pipeline_mode=pl.Buffered(buffer_count=1))

        def const_spec(shape):
            return pl.BlockSpec(shape, lambda i: tuple(0 for _ in shape), **const_kwargs)

        return pl.pallas_call(
            _entity_encoder_kernel,
            out_shape=jax.ShapeDtypeStruct((n_pad, hidden), out_dtype),
            grid_spec=pltpu.PrefetchScalarGridSpec(
                num_scalar_prefetch=0,
                grid=grid,
                in_specs=[
                    # observations tiled over the batch (row) axis
                    pl.BlockSpec((bm, in_features), lambda i: (i, 0)),
                    # weights / biases: constant index_map -> fetched once, resident
                    const_spec((in_features, hidden)),
                    const_spec((1, hidden)),
                    const_spec((hidden, hidden)),
                    const_spec((1, hidden)),
                ],
                out_specs=pl.BlockSpec((bm, hidden), lambda i: (i, 0)),
            ),
            compiler_params=pltpu.CompilerParams(
                dimension_semantics=("parallel",),
                vmem_limit_bytes=int(vmem_limit_bytes),
            ),
        )

    args = (observation, w1, b1, w2, b2)
    if single_buffer_weights:
        try:
            out = build_call(True)(*args)
        except Exception:
            # Older JAX / lowering without pipeline_mode support: plain double-buffered
            # specs (weights are small, so this only costs a little VMEM).
            out = build_call(False)(*args)
    else:
        out = build_call(False)(*args)

    return out[:n]


# ----------------------------------------------------------------------- parameters


def init_entity_encoder_params(key, in_features, out_features=512, dtype=jnp.float32):
    """Deterministic f32 master params (PyTorch nn.Linear-style uniform bounds)."""
    k1, k2, k3, k4 = jax.random.split(key, 4)
    bound1 = 1.0 / float(in_features) ** 0.5
    bound2 = 1.0 / float(out_features) ** 0.5
    # Stored pre-transposed: (in, out) instead of PyTorch's (out, in).
    w1 = jax.random.uniform(k1, (in_features, out_features), dtype, -bound1, bound1)
    b1 = jax.random.uniform(k2, (out_features,), dtype, -bound1, bound1)
    w2 = jax.random.uniform(k3, (out_features, out_features), dtype, -bound2, bound2)
    b2 = jax.random.uniform(k4, (out_features,), dtype, -bound2, bound2)
    return w1, b1, w2, b2


def prepare_entity_encoder_params(w1, b1, w2, b2, matmul_dtype=jnp.bfloat16):
    """ONE-TIME conversion for the forward path (do NOT call per forward).

    Weights are cast to the MXU dtype (bf16 by default; pass jnp.float32 for exact
    parity with the f32 PyTorch module) and biases are reshaped to (1, hidden) f32,
    so entity_encoder_forward launches no extra conversion kernels.
    """
    return (w1.astype(matmul_dtype),
            b1.astype(jnp.float32).reshape(1, -1),
            w2.astype(matmul_dtype),
            b2.astype(jnp.float32).reshape(1, -1))


def _reference_forward(x, w1, b1, w2, b2):
    """Pure-JAX reference mirroring the kernel's dtype handling."""
    if x.ndim == 1:
        x = x.reshape(1, -1)
    x = x.astype(w1.dtype)
    h1 = jnp.dot(x, w1, preferred_element_type=jnp.float32)
    h1 = jnp.maximum(h1 + b1.reshape(1, -1).astype(jnp.float32), 0.0)
    h2 = jnp.dot(h1.astype(w2.dtype), w2, preferred_element_type=jnp.float32)
    h2 = jnp.maximum(h2 + b2.reshape(1, -1).astype(jnp.float32), 0.0)
    return h2


if __name__ == "__main__":
    key = jax.random.PRNGKey(0)
    k_obs, k_obs2, k_obs3, k_params = jax.random.split(key, 4)

    in_features = 32   # entity observation dim
    hidden = 128       # encoder hidden/output dim (default 512 in the module)
    num_obs = 6        # number of observed entities (non-multiple of 16 -> padding)

    w1, b1, w2, b2 = init_entity_encoder_params(k_params, in_features, hidden)

    # Prepared once, outside the forward path (no per-call weight casts).
    p_f32 = prepare_entity_encoder_params(w1, b1, w2, b2, matmul_dtype=jnp.float32)
    p_bf16 = prepare_entity_encoder_params(w1, b1, w2, b2, matmul_dtype=jnp.bfloat16)

    # 1) Batched observations, exact f32 path (tight tolerance).
    obs = jax.random.normal(k_obs, (num_obs, in_features), jnp.float32)
    out_f32 = jax.block_until_ready(entity_encoder_forward(obs, *p_f32))
    ref_f32 = _reference_forward(obs, *p_f32)
    assert out_f32.shape == (num_obs, hidden), out_f32.shape
    assert jnp.allclose(out_f32, ref_f32, atol=1e-4, rtol=1e-4), "f32 batched mismatch"

    # 2) bf16-weight MXU path (compared against a matching bf16 reference).
    out_bf16 = jax.block_until_ready(entity_encoder_forward(obs, *p_bf16))
    ref_bf16 = _reference_forward(obs, *p_bf16)
    assert out_bf16.shape == (num_obs, hidden), out_bf16.shape
    assert jnp.allclose(out_bf16, ref_bf16, atol=5e-2, rtol=5e-2), "bf16 batched mismatch"

    # 3) Larger batch with a small forced block size -> multi-step balanced grid.
    obs_big = jax.random.normal(k_obs2, (70, in_features), jnp.float32)
    out_big = jax.block_until_ready(
        entity_encoder_forward(obs_big, *p_bf16, block_rows=32))
    ref_big = _reference_forward(obs_big, *p_bf16)
    assert out_big.shape == (70, hidden), out_big.shape
    assert jnp.allclose(out_big, ref_big, atol=5e-2, rtol=5e-2), "multi-tile mismatch"

    # 4) Awkward batch size: balanced tiles (600 rows @ block_rows=512 -> ~304-row tiles).
    obs_600 = jax.random.normal(k_obs3, (600, in_features), jnp.float32)
    out_600 = jax.block_until_ready(
        entity_encoder_forward(obs_600, *p_bf16, block_rows=512))
    ref_600 = _reference_forward(obs_600, *p_bf16)
    assert out_600.shape == (600, hidden), out_600.shape
    assert jnp.allclose(out_600, ref_600, atol=5e-2, rtol=5e-2), "balanced-tile mismatch"

    # 5) Single flat observation -> output shape (1, hidden), as in PyTorch.
    obs1 = jax.random.normal(jax.random.PRNGKey(1), (in_features,), jnp.float32)
    out1 = jax.block_until_ready(entity_encoder_forward(obs1, *p_f32))
    ref1 = _reference_forward(obs1, *p_f32)
    assert out1.shape == (1, hidden), out1.shape
    assert jnp.allclose(out1, ref1, atol=1e-4, rtol=1e-4), "1-D mismatch"

    # 6) bf16 output path for downstream consumers that accept bf16.
    out_bf16_out = jax.block_until_ready(
        entity_encoder_forward(obs, *p_bf16, out_dtype=jnp.bfloat16))
    assert out_bf16_out.dtype == jnp.bfloat16
    assert jnp.allclose(out_bf16_out.astype(jnp.float32), ref_bf16,
                        atol=1e-1, rtol=5e-2), "bf16 output mismatch"

    print("KERNEL_OK")
</pallas_src>

<mosaic_0001>
module attributes {stable_mosaic.version = 11 : i64} {
  func.func @_entity_encoder_kernel(%arg0: i32, %arg1: memref<16x32xf32, #tpu.memory_space<vmem>>, %arg2: memref<32x128xf32, #tpu.memory_space<vmem>>, %arg3: memref<1x128xf32, #tpu.memory_space<vmem>>, %arg4: memref<128x128xf32, #tpu.memory_space<vmem>>, %arg5: memref<1x128xf32, #tpu.memory_space<vmem>>, %arg6: memref<16x128xf32, #tpu.memory_space<vmem>>) attributes {dimension_semantics = [#tpu.dimension_semantics<parallel>], iteration_bounds = array<i64: 1>, scalar_prefetch = 0 : i64, scratch_operands = 0 : i64, tpu.core_type = #tpu.core_type<tc>, window_params = [{transform_indices = @transform_0, window_bounds = array<i64: 16, 32>}, {pipeline_mode = #tpu.pipeline_mode<synchronous>, transform_indices = @transform_1, window_bounds = array<i64: 32, 128>}, {pipeline_mode = #tpu.pipeline_mode<synchronous>, transform_indices = @transform_2, window_bounds = array<i64: 1, 128>}, {pipeline_mode = #tpu.pipeline_mode<synchronous>, transform_indices = @transform_3, window_bounds = array<i64: 128, 128>}, {pipeline_mode = #tpu.pipeline_mode<synchronous>, transform_indices = @transform_4, window_bounds = array<i64: 1, 128>}, {transform_indices = @transform_5, window_bounds = array<i64: 16, 128>}]} {
    %c0 = arith.constant 0 : index
    %c0_0 = arith.constant 0 : index
    %0 = vector.load %arg1[%c0, %c0_0] : memref<16x32xf32, #tpu.memory_space<vmem>>, vector<16x32xf32>
    %c0_1 = arith.constant 0 : index
    %c0_2 = arith.constant 0 : index
    %1 = vector.load %arg2[%c0_1, %c0_2] : memref<32x128xf32, #tpu.memory_space<vmem>>, vector<32x128xf32>
    %cst = arith.constant dense<0.000000e+00> : vector<16x128xf32>
    %2 = tpu.matmul %0, %1, %cst {dimension_numbers = #tpu.dot_dimension_numbers<[1], [0], [0], [1], [0, 0, 1, 1], [], []>} : vector<16x32xf32>, vector<32x128xf32>, vector<16x128xf32> -> vector<16x128xf32>
    %c0_3 = arith.constant 0 : index
    %c0_4 = arith.constant 0 : index
    %3 = vector.load %arg3[%c0_3, %c0_4] : memref<1x128xf32, #tpu.memory_space<vmem>>, vector<1x128xf32>
    %4 = vector.broadcast %3 : vector<1x128xf32> to vector<16x128xf32>
    %5 = arith.addf %2, %4 : vector<16x128xf32>
    %cst_5 = arith.constant 0.000000e+00 : f32
    %6 = vector.broadcast %cst_5 : f32 to vector<16x128xf32>
    %7 = arith.maximumf %5, %6 : vector<16x128xf32>
    %c0_6 = arith.constant 0 : index
    %c0_7 = arith.constant 0 : index
    %8 = vector.load %arg4[%c0_6, %c0_7] : memref<128x128xf32, #tpu.memory_space<vmem>>, vector<128x128xf32>
    %cst_8 = arith.constant dense<0.000000e+00> : vector<16x128xf32>
    %9 = tpu.matmul %7, %8, %cst_8 {dimension_numbers = #tpu.dot_dimension_numbers<[1], [0], [0], [1], [0, 0, 1, 1], [], []>} : vector<16x128xf32>, vector<128x128xf32>, vector<16x128xf32> -> vector<16x128xf32>
    %c0_9 = arith.constant 0 : index
    %c0_10 = arith.constant 0 : index
    %10 = vector.load %arg5[%c0_9, %c0_10] : memref<1x128xf32, #tpu.memory_space<vmem>>, vector<1x128xf32>
    %11 = vector.broadcast %10 : vector<1x128xf32> to vector<16x128xf32>
    %12 = arith.addf %9, %11 : vector<16x128xf32>
    %cst_11 = arith.constant 0.000000e+00 : f32
    %13 = vector.broadcast %cst_11 : f32 to vector<16x128xf32>
    %14 = arith.maximumf %12, %13 : vector<16x128xf32>
    %c0_12 = arith.constant 0 : index
    %c0_13 = arith.constant 0 : index
    %15 = vector.load %arg6[%c0_12, %c0_13] : memref<16x128xf32, #tpu.memory_space<vmem>>, vector<16x128xf32>
    tpu.vector_store %arg6[%c0_12, %c0_13], %14 {strides = array<i32>} : memref<16x128xf32, #tpu.memory_space<vmem>>, vector<16x128xf32>,
    return
  }
  func.func @transform_0(%arg0: i32) -> (i32, i32) {
    %c0_i32 = arith.constant 0 : i32
    %c0_i32_0 = arith.constant 0 : i32
    return %arg0, %c0_i32 : i32, i32
  }
  func.func @transform_1(%arg0: i32) -> (i32, i32) {
    %c0_i32 = arith.constant 0 : i32
    %c0_i32_0 = arith.constant 0 : i32
    %c0_i32_1 = arith.constant 0 : i32
    return %c0_i32, %c0_i32_0 : i32, i32
  }
  func.func @transform_2(%arg0: i32) -> (i32, i32) {
    %c0_i32 = arith.constant 0 : i32
    %c0_i32_0 = arith.constant 0 : i32
    %c0_i32_1 = arith.constant 0 : i32
    return %c0_i32, %c0_i32_0 : i32, i32
  }
  func.func @transform_3(%arg0: i32) -> (i32, i32) {
    %c0_i32 = arith.constant 0 : i32
    %c0_i32_0 = arith.constant 0 : i32
    %c0_i32_1 = arith.constant 0 : i32
    return %c0_i32, %c0_i32_0 : i32, i32
  }
  func.func @transform_4(%arg0: i32) -> (i32, i32) {
    %c0_i32 = arith.constant 0 : i32
    %c0_i32_0 = arith.constant 0 : i32
    %c0_i32_1 = arith.constant 0 : i32
    return %c0_i32, %c0_i32_0 : i32, i32
  }
  func.func @transform_5(%arg0: i32) -> (i32, i32) {
    %c0_i32 = arith.constant 0 : i32
    %c0_i32_0 = arith.constant 0 : i32
    return %arg0, %c0_i32 : i32, i32
  }
}

module attributes {stable_mosaic.version = 11 : i64} {
  func.func @_entity_encoder_kernel(%arg0: i32, %arg1: memref<16x32xf32, #tpu.memory_space<vmem>>, %arg2: memref<32x128xf32, #tpu.memory_space<vmem>>, %arg3: memref<1x128xf32, #tpu.memory_space<vmem>>, %arg4: memref<128x128xf32, #tpu.memory_space<vmem>>, %arg5: memref<1x128xf32, #tpu.memory_space<vmem>>, %arg6: memref<16x128xf32, #tpu.memory_space<vmem>>) attributes {dimension_semantics = [#tpu.dimension_semantics<parallel>], iteration_bounds = array<i64: 1>, scalar_prefetch = 0 : i64, scratch_operands = 0 : i64, tpu.core_type = #tpu.core_type<tc>, window_params = [{transform_indices = @transform_0, window_bounds = array<i64: 16, 32>}, {pipeline_mode = #tpu.pipeline_mode<synchronous>, transform_indices = @transform_1, window_bounds = array<i64: 32, 128>}, {pipeline_mode = #tpu.pipeline_mode<synchronous>, transform_indices = @transform_2, window_bounds = array<i64: 1, 128>}, {pipeline_mode = #tpu.pipeline_mode<synchronous>, transform_indices = @transform_3, window_bounds = array<i64: 128, 128>}, {pipeline_mode = #tpu.pipeline_mode<synchronous>, transform_indices = @transform_4, window_bounds = array<i64: 1, 128>}, {transform_indices = @transform_5, window_bounds = array<i64: 16, 128>}]} {
    %c0 = arith.constant 0 : index
    %c0_0 = arith.constant 0 : index
    %0 = vector.load %arg1[%c0, %c0_0] : memref<16x32xf32, #tpu.memory_space<vmem>>, vector<16x32xf32>
    %c0_1 = arith.constant 0 : index
    %c0_2 = arith.constant 0 : index
    %1 = vector.load %arg2[%c0_1, %c0_2] : memref<32x128xf32, #tpu.memory_space<vmem>>, vector<32x128xf32>
    %cst = arith.constant dense<0.000000e+00> : vector<16x128xf32>
    %2 = tpu.matmul %0, %1, %cst {dimension_numbers = #tpu.dot_dimension_numbers<[1], [0], [0], [1], [0, 0, 1, 1], [], []>} : vector<16x32xf32>, vector<32x128xf32>, vector<16x128xf32> -> vector<16x128xf32>
    %c0_3 = arith.constant 0 : index
    %c0_4 = arith.constant 0 : index
    %3 = vector.load %arg3[%c0_3, %c0_4] : memref<1x128xf32, #tpu.memory_space<vmem>>, vector<1x128xf32>
    %4 = vector.broadcast %3 : vector<1x128xf32> to vector<16x128xf32>
    %5 = arith.addf %2, %4 : vector<16x128xf32>
    %cst_5 = arith.constant 0.000000e+00 : f32
    %6 = vector.broadcast %cst_5 : f32 to vector<16x128xf32>
    %7 = arith.maximumf %5, %6 : vector<16x128xf32>
    %c0_6 = arith.constant 0 : index
    %c0_7 = arith.constant 0 : index
    %8 = vector.load %arg4[%c0_6, %c0_7] : memref<128x128xf32, #tpu.memory_space<vmem>>, vector<128x128xf32>
    %cst_8 = arith.constant dense<0.000000e+00> : vector<16x128xf32>
    %9 = tpu.matmul %7, %8, %cst_8 {dimension_numbers = #tpu.dot_dimension_numbers<[1], [0], [0], [1], [0, 0, 1, 1], [], []>} : vector<16x128xf32>, vector<128x128xf32>, vector<16x128xf32> -> vector<16x128xf32>
    %c0_9 = arith.constant 0 : index
    %c0_10 = arith.constant 0 : index
    %10 = vector.load %arg5[%c0_9, %c0_10] : memref<1x128xf32, #tpu.memory_space<vmem>>, vector<1x128xf32>
    %11 = vector.broadcast %10 : vector<1x128xf32> to vector<16x128xf32>
    %12 = arith.addf %9, %11 : vector<16x128xf32>
    %cst_11 = arith.constant 0.000000e+00 : f32
    %13 = vector.broadcast %cst_11 : f32 to vector<16x128xf32>
    %14 = arith.maximumf %12, %13 : vector<16x128xf32>
    %c0_12 = arith.constant 0 : index
    %c0_13 = arith.constant 0 : index
    %15 = vector.load %arg6[%c0_12, %c0_13] : memref<16x128xf32, #tpu.memory_space<vmem>>, vector<16x128xf32>
    tpu.vector_store %arg6[%c0_12, %c0_13], %14 {strides = array<i32>} : memref<16x128xf32, #tpu.memory_space<vmem>>, vector<16x128xf32>,
    return
  }
  func.func @transform_0(%arg0: i32) -> (i32, i32) {
    %c0_i32 = arith.constant 0 : i32
    %c0_i32_0 = arith.constant 0 : i32
    return %arg0, %c0_i32 : i32, i32
  }
  func.func @transform_1(%arg0: i32) -> (i32, i32) {
    %c0_i32 = arith.constant 0 : i32
    %c0_i32_0 = arith.constant 0 : i32
    %c0_i32_1 = arith.constant 0 : i32
    return %c0_i32, %c0_i32_0 : i32, i32
  }
  func.func @transform_2(%arg0: i32) -> (i32, i32) {
    %c0_i32 = arith.constant 0 : i32
    %c0_i32_0 = arith.constant 0 : i32
    %c0_i32_1 = arith.constant 0 : i32
    return %c0_i32, %c0_i32_0 : i32, i32
  }
  func.func @transform_3(%arg0: i32) -> (i32, i32) {
    %c0_i32 = arith.constant 0 : i32
    %c0_i32_0 = arith.constant 0 : i32
    %c0_i32_1 = arith.constant 0 : i32
    return %c0_i32, %c0_i32_0 : i32, i32
  }
  func.func @transform_4(%arg0: i32) -> (i32, i32) {
    %c0_i32 = arith.constant 0 : i32
    %c0_i32_0 = arith.constant 0 : i32
    %c0_i32_1 = arith.constant 0 : i32
    return %c0_i32, %c0_i32_0 : i32, i32
  }
  func.func @transform_5(%arg0: i32) -> (i32, i32) {
    %c0_i32 = arith.constant 0 : i32
    %c0_i32_0 = arith.constant 0 : i32
    return %arg0, %c0_i32 : i32, i32
  }
}

</mosaic_0001>

<llo_original>
// kernel: tpu_custom_call.1
$region0: #{tpu_custom_call.1}
  #allocation0 [shape = 'u32[]', space=smem, size = 0x4, offset = 0x4, fixed_abs, tag = 'smem constant byte address 0x4 - core index']
  #allocation1 [shape = 'u32[144,128]{1,0:T(1,128)}', space=vmem, size = 0x12000, scoped, tag = 'internal scratch']
  %s0 = inlined_call_operand.hbm [shape: f32[16,32], index: 0, kind: input, shape index: {}]
  %s1 = inlined_call_operand.hbm [shape: f32[32,128], index: 1, kind: input, shape index: {}]
  %s2 = inlined_call_operand.vmem [shape: f32[1,128], index: 2, kind: input, shape index: {}]
  %s3 = inlined_call_operand.hbm [shape: f32[128,128], index: 3, kind: input, shape index: {}]
  %s4 = inlined_call_operand.vmem [shape: f32[1,128], index: 4, kind: input, shape index: {}]
  %s5 = inlined_call_operand.hbm [shape: f32[16,128], index: 5, kind: output, shape index: {}]
  %s6 = sld [smem:[#allocation0]]
  $region42: #{tpu_custom_call.1} parent=0
    _
  %s8 = ssub.s32 1, %s6
  %s9 = scalar_select 0, %s8, %s6
  $region1: #{tpu_custom_call.1} parent=0
    #allocation2 [shape = 'u8[8192]{0}', space=vmem, size = 0x2000, scoped, tag = 'input window, operand 0, single buffered']
    #allocation3 [shape = 's32[1]{0}', space=sflag, size = 0x4, scoped, tag = 'scoped memory for tpu_custom_call.1']
    #allocation4 [shape = 's32[1]{0}', space=sflag, size = 0x4, scoped, tag = 'scoped memory for tpu_custom_call.1']
    #allocation5 [shape = 'u8[16384]{0}', space=vmem, size = 0x4000, scoped, tag = 'input window, operand 1, single buffered']
    #allocation6 [shape = 's32[1]{0}', space=sflag, size = 0x4, scoped, tag = 'scoped memory for tpu_custom_call.1']
    #allocation7 [shape = 'u8[65536]{0}', space=vmem, size = 0x10000, scoped, tag = 'input window, operand 3, single buffered']
    #allocation8 [shape = 'u8[8192]{0}', space=vmem, size = 0x2000, scoped, tag = 'output window, operand 0, single buffered']
    %10 = vsyncpa [#allocation3], 0
    %11 = vsyncpa [#allocation6], 0
    %12 = vsyncpa [#allocation4], 0
    // Predicated region
    $region2: #{tpu_custom_call.1} parent=1 // pred_check
      _
    $region3: #{tpu_custom_call.1} parent=1 // pred_check_branch
      %14 = sbr.rel (0) target = $region5
    $region4: #{tpu_custom_call.1} parent=1 // pred_region
      %s16 = ssub.s32 256, 256
      %17 = vsyncadd [#allocation3], %s16
      %s18 = sshll.u32 [#allocation2], 4
      %s19 = int_to_ptr.vmem [resolvable:$true] %s18
      %24 = dma.hbm_to_vmem [thread:$0]  %s0, 256, %s19, [#allocation3], 128, 128, 8
    $region5: #{tpu_custom_call.1} parent=1 // pred_fallthru
      _
    // Predicated region
    $region6: #{tpu_custom_call.1} parent=1 // pred_check
      _
    $region7: #{tpu_custom_call.1} parent=1 // pred_check_branch
      %26 = sbr.rel (0) target = $region9
    $region8: #{tpu_custom_call.1} parent=1 // pred_region
      %s28 = ssub.s32 512, 512
      %29 = vsyncadd [#allocation6], %s28
      %s30 = sshll.u32 [#allocation5], 4
      %s31 = int_to_ptr.vmem [resolvable:$true] %s30
      %36 = dma.hbm_to_vmem [thread:$0]  %s1, 512, %s31, [#allocation6], 128, 128, 8
    $region9: #{tpu_custom_call.1} parent=1 // pred_fallthru
      _
    // Predicated region
    $region10: #{tpu_custom_call.1} parent=1 // pred_check
      _
    $region11: #{tpu_custom_call.1} parent=1 // pred_check_branch
      %38 = sbr.rel (0) target = $region13
    $region12: #{tpu_custom_call.1} parent=1 // pred_region
      _
    $region13: #{tpu_custom_call.1} parent=1 // pred_fallthru
      _
    // Predicated region
    $region14: #{tpu_custom_call.1} parent=1 // pred_check
      _
    $region15: #{tpu_custom_call.1} parent=1 // pred_check_branch
      %40 = sbr.rel (0) target = $region17
    $region16: #{tpu_custom_call.1} parent=1 // pred_region
      %s42 = ssub.s32 2048, 2048
      %43 = vsyncadd [#allocation6], %s42
      %s44 = sshll.u32 [#allocation7], 4
      %s45 = int_to_ptr.vmem [resolvable:$true] %s44
      %50 = dma.hbm_to_vmem [thread:$0]  %s3, 2048, %s45, [#allocation6], 128, 128, 8
    $region17: #{tpu_custom_call.1} parent=1 // pred_fallthru
      _
    // Predicated region
    $region18: #{tpu_custom_call.1} parent=1 // pred_check
      _
    $region19: #{tpu_custom_call.1} parent=1 // pred_check_branch
      %52 = sbr.rel (0) target = $region21
    $region20: #{tpu_custom_call.1} parent=1 // pred_region
      _
    $region21: #{tpu_custom_call.1} parent=1 // pred_fallthru
      _
    // Predicated region
    $region22: #{tpu_custom_call.1} parent=1 // pred_check
      _
    $region23: #{tpu_custom_call.1} parent=1 // pred_check_branch
      %54 = sbr.rel (0) target = $region25
    $region24: #{tpu_custom_call.1} parent=1 // pred_region
      %55 = dma.done [#allocation3], 256
    $region25: #{tpu_custom_call.1} parent=1 // pred_fallthru
      _
    // Predicated region
    $region26: #{tpu_custom_call.1} parent=1 // pred_check
      _
    $region27: #{tpu_custom_call.1} parent=1 // pred_check_branch
      %57 = sbr.rel (0) target = $region29
    $region28: #{tpu_custom_call.1} parent=1 // pred_region
      %58 = dma.done [#allocation6], 512
    $region29: #{tpu_custom_call.1} parent=1 // pred_fallthru
      _
    // Predicated region
    $region30: #{tpu_custom_call.1} parent=1 // pred_check
      _
    $region31: #{tpu_custom_call.1} parent=1 // pred_check_branch
      %60 = sbr.rel (0) target = $region33
    $region32: #{tpu_custom_call.1} parent=1 // pred_region
      %61 = dma.done [#allocation6], 2048
    $region33: #{tpu_custom_call.1} parent=1 // pred_fallthru
      _
    %v62 = vld [vmem:[#allocation2] sm:$0xff]
    %v63 = vld [vmem:[#allocation2 + $0x8] sm:$0xff]
    %v64 = vld [vmem:[#allocation5] sm:$0xff]
    %v65 = vld [vmem:[#allocation5 + $0x8] sm:$0xff]
    %v66 = vld [vmem:[#allocation5 + $0x10] sm:$0xff]
    %v67 = vld [vmem:[#allocation5 + $0x18] sm:$0xff]
    %v68 = vld [vmem:[%s2] sm:$0x1]
    %v70 = vlaneseq
    %v71 = vshrl.u32 %v70, 7
    %v72 = vsub.s32 0, %v71
    %v73 = vrot.slane %v68, %v72
    %vm75 = vcmask 261120
    %v77 = vsel %vm75, %v62, 0
    %v80 = vsel %vm75, %v63, 0
    %82 = vmatprep.subr.mxu0 0.0
    %83 = vmatpush1.msra.mxu0 %v64
    %84 = vmatprep.subr.mxu0 0.0
    %85 = vmatpush1.msra.mxu0 %v65
    %86 = vmatprep.subr.mxu0 0.0
    %87 = vmatpush1.msra.mxu0 %v66
    %88 = vmatprep.subr.mxu0 0.0
    %89 = vmatpush1.msra.mxu0 %v67
    %90 = vmatprep.subr.mxu0 0.0
    %91 = vmatpush1.msra.mxu0 0.0
    %92 = vmatprep.subr.mxu0 0.0
    %93 = vmatpush1.msra.mxu0 0.0
    %94 = vmatprep.subr.mxu0 0.0
    %95 = vmatpush1.msra.mxu0 0.0
    %96 = vmatprep.subr.mxu0 0.0
    %97 = vmatpush1.msra.mxu0 0.0
    %98 = vmatprep.subr.mxu0 0.0
    %99 = vmatpush1.msra.mxu0 0.0
    %100 = vmatprep.subr.mxu0 0.0
    %101 = vmatpush1.msra.mxu0 0.0
    %102 = vmatprep.subr.mxu0 0.0
    %103 = vmatpush1.msra.mxu0 0.0
    %104 = vmatprep.subr.mxu0 0.0
    %105 = vmatpush1.msra.mxu0 0.0
    %106 = vmatprep.subr.mxu0 0.0
    %107 = vmatpush1.msra.mxu0 0.0
    %108 = vmatprep.subr.mxu0 0.0
    %109 = vmatpush1.msra.mxu0 0.0
    %110 = vmatprep.subr.mxu0 0.0
    %111 = vmatpush1.msra.mxu0 0.0
    %112 = vmatprep.subr.mxu0 0.0
    %113 = vmatpush1.msra.mxu0 0.0
    %114 = vmatprep.subr.mxu0 0.0
    %115 = vmatpush1.msra.mxu0 0.0
    %116 = vmatprep.subr.mxu0 0.0
    %117 = vmatpush1.msra.mxu0 0.0
    %118 = vmatprep.subr.mxu0 0.0
    %119 = vmatpush1.msra.mxu0 0.0
    %120 = vmatprep.subr.mxu0 0.0
    %121 = vmatpush1.msra.mxu0 0.0
    %122 = vmatprep.subr.mxu0 0.0
    %123 = vmatpush1.msra.mxu0 0.0
    %124 = vmatprep.subr.mxu0 0.0
    %125 = vmatpush1.msra.mxu0 0.0
    %126 = vmatprep.subr.mxu0 0.0
    %127 = vmatpush1.msra.mxu0 0.0
    %128 = vmatprep.subr.mxu0 0.0
    %129 = vmatpush1.msra.mxu0 0.0
    %130 = vmatprep.subr.mxu0 0.0
    %131 = vmatpush1.msra.mxu0 0.0
    %132 = vmatprep.subr.mxu0 0.0
    %133 = vmatpush1.msra.mxu0 0.0
    %134 = vmatprep.subr.mxu0 0.0
    %135 = vmatpush1.msra.mxu0 0.0
    %136 = vmatprep.subr.mxu0 0.0
    %137 = vmatpush1.msra.mxu0 0.0
    %138 = vmatprep.subr.mxu0 0.0
    %139 = vmatpush1.msra.mxu0 0.0
    %140 = vmatprep.subr.mxu0 0.0
    %141 = vmatpush1.msra.mxu0 0.0
    %142 = vmatprep.subr.mxu0 0.0
    %143 = vmatpush1.msra.mxu0 0.0
    %144 = vmatprep.subr.mxu0 0.0
    %145 = vmatpush1.msra.mxu0 0.0
    %146 = vmatprep.mubr.f32.mxu0 0.0
    %147 = vmatmul.mubr.f32.gmra.mrb[0].mxu0 %v77
    %v148 = vpop.f32.mrb[0].mxu0
    %v149 = vadd.f32 %v73, %v148
    %v150 = vpop.f32.mrb[0].mxu0
    %151 = vmatprep.mubr.f32.mxu0 0.0
    %152 = vmatmul.mubr.f32.gmra.mrb[0].mxu0 %v80
    %v153 = vpop.f32.mrb[0].mxu0
    %v154 = vadd.f32 %v73, %v153
    %v155 = vpop.f32.mrb[0].mxu0
    %156 = vdwg.mxu0
    %v157 = vmax.f32 %v149, 0.0
    %v158 = vmax.f32 %v154, 0.0
    %v159 = vld [vmem:[#allocation7] sm:$0xff]
    %v160 = vld [vmem:[#allocation7 + $0x8] sm:$0xff]
    %v161 = vld [vmem:[#allocation7 + $0x10] sm:$0xff]
    %v162 = vld [vmem:[#allocation7 + $0x18] sm:$0xff]
    %v163 = vld [vmem:[#allocation7 + $0x20] sm:$0xff]
    %v164 = vld [vmem:[#allocation7 + $0x28] sm:$0xff]
    %v165 = vld [vmem:[#allocation7 + $0x30] sm:$0xff]
    %v166 = vld [vmem:[#allocation7 + $0x38] sm:$0xff]
    %v167 = vld [vmem:[#allocation7 + $0x40] sm:$0xff]
    %v168 = vld [vmem:[#allocation7 + $0x48] sm:$0xff]
    %v169 = vld [vmem:[#allocation7 + $0x50] sm:$0xff]
    %v170 = vld [vmem:[#allocation7 + $0x58] sm:$0xff]
    %v171 = vld [vmem:[#allocation7 + $0x60] sm:$0xff]
    %v172 = vld [vmem:[#allocation7 + $0x68] sm:$0xff]
    %v173 = vld [vmem:[#allocation7 + $0x70] sm:$0xff]
    %v174 = vld [vmem:[#allocation7 + $0x78] sm:$0xff]
    %v175 = vld [vmem:[%s4] sm:$0x1]
    %v177 = vlaneseq
    %v178 = vshrl.u32 %v177, 7
    %v179 = vsub.s32 0, %v178
    %v180 = vrot.slane %v175, %v179
    %182 = vmatprep.subr.mxu0 0.0
    %183 = vmatpush1.msra.mxu0 %v159
    %184 = vmatprep.subr.mxu0 0.0
    %185 = vmatpush1.msra.mxu0 %v160
    %186 = vmatprep.subr.mxu0 0.0
    %187 = vmatpush1.msra.mxu0 %v161
    %188 = vmatprep.subr.mxu0 0.0
    %189 = vmatpush1.msra.mxu0 %v162
    %190 = vmatprep.subr.mxu0 0.0
    %191 = vmatpush1.msra.mxu0 %v163
    %192 = vmatprep.subr.mxu0 0.0
    %193 = vmatpush1.msra.mxu0 %v164
    %194 = vmatprep.subr.mxu0 0.0
    %195 = vmatpush1.msra.mxu0 %v165
    %196 = vmatprep.subr.mxu0 0.0
    %197 = vmatpush1.msra.mxu0 %v166
    %198 = vmatprep.subr.mxu0 0.0
    %199 = vmatpush1.msra.mxu0 %v167
    %200 = vmatprep.subr.mxu0 0.0
    %201 = vmatpush1.msra.mxu0 %v168
    %202 = vmatprep.subr.mxu0 0.0
    %203 = vmatpush1.msra.mxu0 %v169
    %204 = vmatprep.subr.mxu0 0.0
    %205 = vmatpush1.msra.mxu0 %v170
    %206 = vmatprep.subr.mxu0 0.0
    %207 = vmatpush1.msra.mxu0 %v171
    %208 = vmatprep.subr.mxu0 0.0
    %209 = vmatpush1.msra.mxu0 %v172
    %210 = vmatprep.subr.mxu0 0.0
    %211 = vmatpush1.msra.mxu0 %v173
    %212 = vmatprep.subr.mxu0 0.0
    %213 = vmatpush1.msra.mxu0 %v174
    %214 = vmatprep.subr.mxu0 0.0
    %215 = vmatpush1.msra.mxu0 0.0
    %216 = vmatprep.subr.mxu0 0.0
    %217 = vmatpush1.msra.mxu0 0.0
    %218 = vmatprep.subr.mxu0 0.0
    %219 = vmatpush1.msra.mxu0 0.0
    %220 = vmatprep.subr.mxu0 0.0
    %221 = vmatpush1.msra.mxu0 0.0
    %222 = vmatprep.subr.mxu0 0.0
    %223 = vmatpush1.msra.mxu0 0.0
    %224 = vmatprep.subr.mxu0 0.0
    %225 = vmatpush1.msra.mxu0 0.0
    %226 = vmatprep.subr.mxu0 0.0
    %227 = vmatpush1.msra.mxu0 0.0
    %228 = vmatprep.subr.mxu0 0.0
    %229 = vmatpush1.msra.mxu0 0.0
    %230 = vmatprep.subr.mxu0 0.0
    %231 = vmatpush1.msra.mxu0 0.0
    %232 = vmatprep.subr.mxu0 0.0
    %233 = vmatpush1.msra.mxu0 0.0
    %234 = vmatprep.subr.mxu0 0.0
    %235 = vmatpush1.msra.mxu0 0.0
    %236 = vmatprep.subr.mxu0 0.0
    %237 = vmatpush1.msra.mxu0 0.0
    %238 = vmatprep.subr.mxu0 0.0
    %239 = vmatpush1.msra.mxu0 0.0
    %240 = vmatprep.subr.mxu0 0.0
    %241 = vmatpush1.msra.mxu0 0.0
    %242 = vmatprep.subr.mxu0 0.0
    %243 = vmatpush1.msra.mxu0 0.0
    %244 = vmatprep.subr.mxu0 0.0
    %245 = vmatpush1.msra.mxu0 0.0
    %246 = vmatprep.mubr.f32.mxu0 0.0
    %247 = vmatmul.mubr.f32.gmra.mrb[0].mxu0 %v157
    %v248 = vpop.f32.mrb[0].mxu0
    %v249 = vadd.f32 %v180, %v248
    %v250 = vpop.f32.mrb[0].mxu0
    %251 = vmatprep.mubr.f32.mxu0 0.0
    %252 = vmatmul.mubr.f32.gmra.mrb[0].mxu0 %v158
    %v253 = vpop.f32.mrb[0].mxu0
    %v254 = vadd.f32 %v180, %v253
    %v255 = vpop.f32.mrb[0].mxu0
    %256 = vdwg.mxu0
    %v257 = vmax.f32 %v249, 0.0
    %v258 = vmax.f32 %v254, 0.0
    %259 = vst [vmem:[#allocation8] sm:$0xff] %v257
    %260 = vst [vmem:[#allocation8 + $0x8] sm:$0xff] %v258
    // Predicated region
    $region34: #{tpu_custom_call.1} parent=1 // pred_check
      _
    $region35: #{tpu_custom_call.1} parent=1 // pred_check_branch
      %262 = sbr.rel (0) target = $region37
    $region36: #{tpu_custom_call.1} parent=1 // pred_region
      %s264 = ssub.s32 256, 256
      %265 = vsyncadd [#allocation4], %s264
      %s266 = sshll.u32 [#allocation8], 4
      %s267 = int_to_ptr.vmem [resolvable:$true] %s266
      %272 = dma.vmem_to_hbm [thread:$0]  %s267, 256, %s5, [#allocation4], 128, 128, 8
    $region37: #{tpu_custom_call.1} parent=1 // pred_fallthru
      _
    // Predicated region
    $region38: #{tpu_custom_call.1} parent=1 // pred_check
      _
    $region39: #{tpu_custom_call.1} parent=1 // pred_check_branch
      %274 = sbr.rel (0) target = $region41
    $region40: #{tpu_custom_call.1} parent=1 // pred_region
      %275 = dma.done [#allocation4], 256
    $region41: #{tpu_custom_call.1} parent=1 // pred_fallthru
      _
    %276 = vsyncpa [#allocation3], 1
    %277 = vsyncpa [#allocation6], 1
    %278 = vsyncpa [#allocation4], 1

// kernel: tpu_custom_call.1
$region0: #{tpu_custom_call.1}
  #allocation0 [shape = 'u32[]', space=smem, size = 0x4, offset = 0x4, fixed_abs, tag = 'smem constant byte address 0x4 - core index']
  #allocation1 [shape = 'u32[144,128]{1,0:T(1,128)}', space=vmem, size = 0x12000, scoped, tag = 'internal scratch']
  %s0 = inlined_call_operand.hbm [shape: f32[16,32], index: 0, kind: input, shape index: {}]
  %s1 = inlined_call_operand.hbm [shape: f32[32,128], index: 1, kind: input, shape index: {}]
  %s2 = inlined_call_operand.vmem [shape: f32[1,128], index: 2, kind: input, shape index: {}]
  %s3 = inlined_call_operand.hbm [shape: f32[128,128], index: 3, kind: input, shape index: {}]
  %s4 = inlined_call_operand.vmem [shape: f32[1,128], index: 4, kind: input, shape index: {}]
  %s5 = inlined_call_operand.hbm [shape: f32[16,128], index: 5, kind: output, shape index: {}]
  %s6 = sld [smem:[#allocation0]]
  $region42: #{tpu_custom_call.1} parent=0
    _
  %s8 = ssub.s32 1, %s6
  %s9 = scalar_select 0, %s8, %s6
  $region1: #{tpu_custom_call.1} parent=0
    #allocation2 [shape = 'u8[8192]{0}', space=vmem, size = 0x2000, scoped, tag = 'input window, operand 0, single buffered']
    #allocation3 [shape = 's32[1]{0}', space=sflag, size = 0x4, scoped, tag = 'scoped memory for tpu_custom_call.1']
    #allocation4 [shape = 's32[1]{0}', space=sflag, size = 0x4, scoped, tag = 'scoped memory for tpu_custom_call.1']
    #allocation5 [shape = 'u8[16384]{0}', space=vmem, size = 0x4000, scoped, tag = 'input window, operand 1, single buffered']
    #allocation6 [shape = 's32[1]{0}', space=sflag, size = 0x4, scoped, tag = 'scoped memory for tpu_custom_call.1']
    #allocation7 [shape = 'u8[65536]{0}', space=vmem, size = 0x10000, scoped, tag = 'input window, operand 3, single buffered']
    #allocation8 [shape = 'u8[8192]{0}', space=vmem, size = 0x2000, scoped, tag = 'output window, operand 0, single buffered']
    %10 = vsyncpa [#allocation3], 0
    %11 = vsyncpa [#allocation6], 0
    %12 = vsyncpa [#allocation4], 0
    // Predicated region
    $region2: #{tpu_custom_call.1} parent=1 // pred_check
      _
    $region3: #{tpu_custom_call.1} parent=1 // pred_check_branch
      %14 = sbr.rel (0) target = $region5
    $region4: #{tpu_custom_call.1} parent=1 // pred_region
      %s16 = ssub.s32 256, 256
      %17 = vsyncadd [#allocation3], %s16
      %s18 = sshll.u32 [#allocation2], 4
      %s19 = int_to_ptr.vmem [resolvable:$true] %s18
      %24 = dma.hbm_to_vmem [thread:$0]  %s0, 256, %s19, [#allocation3], 128, 128, 8
    $region5: #{tpu_custom_call.1} parent=1 // pred_fallthru
      _
    // Predicated region
    $region6: #{tpu_custom_call.1} parent=1 // pred_check
      _
    $region7: #{tpu_custom_call.1} parent=1 // pred_check_branch
      %26 = sbr.rel (0) target = $region9
    $region8: #{tpu_custom_call.1} parent=1 // pred_region
      %s28 = ssub.s32 512, 512
      %29 = vsyncadd [#allocation6], %s28
      %s30 = sshll.u32 [#allocation5], 4
      %s31 = int_to_ptr.vmem [resolvable:$true] %s30
      %36 = dma.hbm_to_vmem [thread:$0]  %s1, 512, %s31, [#allocation6], 128, 128, 8
    $region9: #{tpu_custom_call.1} parent=1 // pred_fallthru
      _
    // Predicated region
    $region10: #{tpu_custom_call.1} parent=1 // pred_check
      _
    $region11: #{tpu_custom_call.1} parent=1 // pred_check_branch
      %38 = sbr.rel (0) target = $region13
    $region12: #{tpu_custom_call.1} parent=1 // pred_region
      _
    $region13: #{tpu_custom_call.1} parent=1 // pred_fallthru
      _
    // Predicated region
    $region14: #{tpu_custom_call.1} parent=1 // pred_check
      _
    $region15: #{tpu_custom_call.1} parent=1 // pred_check_branch
      %40 = sbr.rel (0) target = $region17
    $region16: #{tpu_custom_call.1} parent=1 // pred_region
      %s42 = ssub.s32 2048, 2048
      %43 = vsyncadd [#allocation6], %s42
      %s44 = sshll.u32 [#allocation7], 4
      %s45 = int_to_ptr.vmem [resolvable:$true] %s44
      %50 = dma.hbm_to_vmem [thread:$0]  %s3, 2048, %s45, [#allocation6], 128, 128, 8
    $region17: #{tpu_custom_call.1} parent=1 // pred_fallthru
      _
    // Predicated region
    $region18: #{tpu_custom_call.1} parent=1 // pred_check
      _
    $region19: #{tpu_custom_call.1} parent=1 // pred_check_branch
      %52 = sbr.rel (0) target = $region21
    $region20: #{tpu_custom_call.1} parent=1 // pred_region
      _
    $region21: #{tpu_custom_call.1} parent=1 // pred_fallthru
      _
    // Predicated region
    $region22: #{tpu_custom_call.1} parent=1 // pred_check
      _
    $region23: #{tpu_custom_call.1} parent=1 // pred_check_branch
      %54 = sbr.rel (0) target = $region25
    $region24: #{tpu_custom_call.1} parent=1 // pred_region
      %55 = dma.done [#allocation3], 256
    $region25: #{tpu_custom_call.1} parent=1 // pred_fallthru
      _
    // Predicated region
    $region26: #{tpu_custom_call.1} parent=1 // pred_check
      _
    $region27: #{tpu_custom_call.1} parent=1 // pred_check_branch
      %57 = sbr.rel (0) target = $region29
    $region28: #{tpu_custom_call.1} parent=1 // pred_region
      %58 = dma.done [#allocation6], 512
    $region29: #{tpu_custom_call.1} parent=1 // pred_fallthru
      _
    // Predicated region
    $region30: #{tpu_custom_call.1} parent=1 // pred_check
      _
    $region31: #{tpu_custom_call.1} parent=1 // pred_check_branch
      %60 = sbr.rel (0) target = $region33
    $region32: #{tpu_custom_call.1} parent=1 // pred_region
      %61 = dma.done [#allocation6], 2048
    $region33: #{tpu_custom_call.1} parent=1 // pred_fallthru
      _
    %v62 = vld [vmem:[#allocation2] sm:$0xff]
    %v63 = vld [vmem:[#allocation2 + $0x8] sm:$0xff]
    %v64 = vld [vmem:[#allocation5] sm:$0xff]
    %v65 = vld [vmem:[#allocation5 + $0x8] sm:$0xff]
    %v66 = vld [vmem:[#allocation5 + $0x10] sm:$0xff]
    %v67 = vld [vmem:[#allocation5 + $0x18] sm:$0xff]
    %v68 = vld [vmem:[%s2] sm:$0x1]
    %v70 = vlaneseq
    %v71 = vshrl.u32 %v70, 7
    %v72 = vsub.s32 0, %v71
    %v73 = vrot.slane %v68, %v72
    %vm75 = vcmask 261120
    %v77 = vsel %vm75, %v62, 0
    %v80 = vsel %vm75, %v63, 0
    %82 = vmatprep.subr.mxu0 0.0
    %83 = vmatpush1.msra.mxu0 %v64
    %84 = vmatprep.subr.mxu0 0.0
    %85 = vmatpush1.msra.mxu0 %v65
    %86 = vmatprep.subr.mxu0 0.0
    %87 = vmatpush1.msra.mxu0 %v66
    %88 = vmatprep.subr.mxu0 0.0
    %89 = vmatpush1.msra.mxu0 %v67
    %90 = vmatprep.subr.mxu0 0.0
    %91 = vmatpush1.msra.mxu0 0.0
    %92 = vmatprep.subr.mxu0 0.0
    %93 = vmatpush1.msra.mxu0 0.0
    %94 = vmatprep.subr.mxu0 0.0
    %95 = vmatpush1.msra.mxu0 0.0
    %96 = vmatprep.subr.mxu0 0.0
    %97 = vmatpush1.msra.mxu0 0.0
    %98 = vmatprep.subr.mxu0 0.0
    %99 = vmatpush1.msra.mxu0 0.0
    %100 = vmatprep.subr.mxu0 0.0
    %101 = vmatpush1.msra.mxu0 0.0
    %102 = vmatprep.subr.mxu0 0.0
    %103 = vmatpush1.msra.mxu0 0.0
    %104 = vmatprep.subr.mxu0 0.0
    %105 = vmatpush1.msra.mxu0 0.0
    %106 = vmatprep.subr.mxu0 0.0
    %107 = vmatpush1.msra.mxu0 0.0
    %108 = vmatprep.subr.mxu0 0.0
    %109 = vmatpush1.msra.mxu0 0.0
    %110 = vmatprep.subr.mxu0 0.0
    %111 = vmatpush1.msra.mxu0 0.0
    %112 = vmatprep.subr.mxu0 0.0
    %113 = vmatpush1.msra.mxu0 0.0
    %114 = vmatprep.subr.mxu0 0.0
    %115 = vmatpush1.msra.mxu0 0.0
    %116 = vmatprep.subr.mxu0 0.0
    %117 = vmatpush1.msra.mxu0 0.0
    %118 = vmatprep.subr.mxu0 0.0
    %119 = vmatpush1.msra.mxu0 0.0
    %120 = vmatprep.subr.mxu0 0.0
    %121 = vmatpush1.msra.mxu0 0.0
    %122 = vmatprep.subr.mxu0 0.0
    %123 = vmatpush1.msra.mxu0 0.0
    %124 = vmatprep.subr.mxu0 0.0
    %125 = vmatpush1.msra.mxu0 0.0
    %126 = vmatprep.subr.mxu0 0.0
    %127 = vmatpush1.msra.mxu0 0.0
    %128 = vmatprep.subr.mxu0 0.0
    %129 = vmatpush1.msra.mxu0 0.0
    %130 = vmatprep.subr.mxu0 0.0
    %131 = vmatpush1.msra.mxu0 0.0
    %132 = vmatprep.subr.mxu0 0.0
    %133 = vmatpush1.msra.mxu0 0.0
    %134 = vmatprep.subr.mxu0 0.0
    %135 = vmatpush1.msra.mxu0 0.0
    %136 = vmatprep.subr.mxu0 0.0
    %137 = vmatpush1.msra.mxu0 0.0
    %138 = vmatprep.subr.mxu0 0.0
    %139 = vmatpush1.msra.mxu0 0.0
    %140 = vmatprep.subr.mxu0 0.0
    %141 = vmatpush1.msra.mxu0 0.0
    %142 = vmatprep.subr.mxu0 0.0
    %143 = vmatpush1.msra.mxu0 0.0
    %144 = vmatprep.subr.mxu0 0.0
    %145 = vmatpush1.msra.mxu0 0.0
    %146 = vmatprep.mubr.f32.mxu0 0.0
    %147 = vmatmul.mubr.f32.gmra.mrb[0].mxu0 %v77
    %v148 = vpop.f32.mrb[0].mxu0
    %v149 = vadd.f32 %v73, %v148
    %v150 = vpop.f32.mrb[0].mxu0
    %151 = vmatprep.mubr.f32.mxu0 0.0
    %152 = vmatmul.mubr.f32.gmra.mrb[0].mxu0 %v80
    %v153 = vpop.f32.mrb[0].mxu0
    %v154 = vadd.f32 %v73, %v153
    %v155 = vpop.f32.mrb[0].mxu0
    %156 = vdwg.mxu0
    %v157 = vmax.f32 %v149, 0.0
    %v158 = vmax.f32 %v154, 0.0
    %v159 = vld [vmem:[#allocation7] sm:$0xff]
    %v160 = vld [vmem:[#allocation7 + $0x8] sm:$0xff]
    %v161 = vld [vmem:[#allocation7 + $0x10] sm:$0xff]
    %v162 = vld [vmem:[#allocation7 + $0x18] sm:$0xff]
    %v163 = vld [vmem:[#allocation7 + $0x20] sm:$0xff]
    %v164 = vld [vmem:[#allocation7 + $0x28] sm:$0xff]
    %v165 = vld [vmem:[#allocation7 + $0x30] sm:$0xff]
    %v166 = vld [vmem:[#allocation7 + $0x38] sm:$0xff]
    %v167 = vld [vmem:[#allocation7 + $0x40] sm:$0xff]
    %v168 = vld [vmem:[#allocation7 + $0x48] sm:$0xff]
    %v169 = vld [vmem:[#allocation7 + $0x50] sm:$0xff]
    %v170 = vld [vmem:[#allocation7 + $0x58] sm:$0xff]
    %v171 = vld [vmem:[#allocation7 + $0x60] sm:$0xff]
    %v172 = vld [vmem:[#allocation7 + $0x68] sm:$0xff]
    %v173 = vld [vmem:[#allocation7 + $0x70] sm:$0xff]
    %v174 = vld [vmem:[#allocation7 + $0x78] sm:$0xff]
    %v175 = vld [vmem:[%s4] sm:$0x1]
    %v177 = vlaneseq
    %v178 = vshrl.u32 %v177, 7
    %v179 = vsub.s32 0, %v178
    %v180 = vrot.slane %v175, %v179
    %182 = vmatprep.subr.mxu0 0.0
    %183 = vmatpush1.msra.mxu0 %v159
    %184 = vmatprep.subr.mxu0 0.0
    %185 = vmatpush1.msra.mxu0 %v160
    %186 = vmatprep.subr.mxu0 0.0
    %187 = vmatpush1.msra.mxu0 %v161
    %188 = vmatprep.subr.mxu0 0.0
    %189 = vmatpush1.msra.mxu0 %v162
    %190 = vmatprep.subr.mxu0 0.0
    %191 = vmatpush1.msra.mxu0 %v163
    %192 = vmatprep.subr.mxu0 0.0
    %193 = vmatpush1.msra.mxu0 %v164
    %194 = vmatprep.subr.mxu0 0.0
    %195 = vmatpush1.msra.mxu0 %v165
    %196 = vmatprep.subr.mxu0 0.0
    %197 = vmatpush1.msra.mxu0 %v166
    %198 = vmatprep.subr.mxu0 0.0
    %199 = vmatpush1.msra.mxu0 %v167
    %200 = vmatprep.subr.mxu0 0.0
    %201 = vmatpush1.msra.mxu0 %v168
    %202 = vmatprep.subr.mxu0 0.0
    %203 = vmatpush1.msra.mxu0 %v169
    %204 = vmatprep.subr.mxu0 0.0
    %205 = vmatpush1.msra.mxu0 %v170
    %206 = vmatprep.subr.mxu0 0.0
    %207 = vmatpush1.msra.mxu0 %v171
    %208 = vmatprep.subr.mxu0 0.0
    %209 = vmatpush1.msra.mxu0 %v172
    %210 = vmatprep.subr.mxu0 0.0
    %211 = vmatpush1.msra.mxu0 %v173
    %212 = vmatprep.subr.mxu0 0.0
    %213 = vmatpush1.msra.mxu0 %v174
    %214 = vmatprep.subr.mxu0 0.0
    %215 = vmatpush1.msra.mxu0 0.0
    %216 = vmatprep.subr.mxu0 0.0
    %217 = vmatpush1.msra.mxu0 0.0
    %218 = vmatprep.subr.mxu0 0.0
    %219 = vmatpush1.msra.mxu0 0.0
    %220 = vmatprep.subr.mxu0 0.0
    %221 = vmatpush1.msra.mxu0 0.0
    %222 = vmatprep.subr.mxu0 0.0
    %223 = vmatpush1.msra.mxu0 0.0
    %224 = vmatprep.subr.mxu0 0.0
    %225 = vmatpush1.msra.mxu0 0.0
    %226 = vmatprep.subr.mxu0 0.0
    %227 = vmatpush1.msra.mxu0 0.0
    %228 = vmatprep.subr.mxu0 0.0
    %229 = vmatpush1.msra.mxu0 0.0
    %230 = vmatprep.subr.mxu0 0.0
    %231 = vmatpush1.msra.mxu0 0.0
    %232 = vmatprep.subr.mxu0 0.0
    %233 = vmatpush1.msra.mxu0 0.0
    %234 = vmatprep.subr.mxu0 0.0
    %235 = vmatpush1.msra.mxu0 0.0
    %236 = vmatprep.subr.mxu0 0.0
    %237 = vmatpush1.msra.mxu0 0.0
    %238 = vmatprep.subr.mxu0 0.0
    %239 = vmatpush1.msra.mxu0 0.0
    %240 = vmatprep.subr.mxu0 0.0
    %241 = vmatpush1.msra.mxu0 0.0
    %242 = vmatprep.subr.mxu0 0.0
    %243 = vmatpush1.msra.mxu0 0.0
    %244 = vmatprep.subr.mxu0 0.0
    %245 = vmatpush1.msra.mxu0 0.0
    %246 = vmatprep.mubr.f32.mxu0 0.0
    %247 = vmatmul.mubr.f32.gmra.mrb[0].mxu0 %v157
    %v248 = vpop.f32.mrb[0].mxu0
    %v249 = vadd.f32 %v180, %v248
    %v250 = vpop.f32.mrb[0].mxu0
    %251 = vmatprep.mubr.f32.mxu0 0.0
    %252 = vmatmul.mubr.f32.gmra.mrb[0].mxu0 %v158
    %v253 = vpop.f32.mrb[0].mxu0
    %v254 = vadd.f32 %v180, %v253
    %v255 = vpop.f32.mrb[0].mxu0
    %256 = vdwg.mxu0
    %v257 = vmax.f32 %v249, 0.0
    %v258 = vmax.f32 %v254, 0.0
    %259 = vst [vmem:[#allocation8] sm:$0xff] %v257
    %260 = vst [vmem:[#allocation8 + $0x8] sm:$0xff] %v258
    // Predicated region
    $region34: #{tpu_custom_call.1} parent=1 // pred_check
      _
    $region35: #{tpu_custom_call.1} parent=1 // pred_check_branch
      %262 = sbr.rel (0) target = $region37
    $region36: #{tpu_custom_call.1} parent=1 // pred_region
      %s264 = ssub.s32 256, 256
      %265 = vsyncadd [#allocation4], %s264
      %s266 = sshll.u32 [#allocation8], 4
      %s267 = int_to_ptr.vmem [resolvable:$true] %s266
      %272 = dma.vmem_to_hbm [thread:$0]  %s267, 256, %s5, [#allocation4], 128, 128, 8
    $region37: #{tpu_custom_call.1} parent=1 // pred_fallthru
      _
    // Predicated region
    $region38: #{tpu_custom_call.1} parent=1 // pred_check
      _
    $region39: #{tpu_custom_call.1} parent=1 // pred_check_branch
      %274 = sbr.rel (0) target = $region41
    $region40: #{tpu_custom_call.1} parent=1 // pred_region
      %275 = dma.done [#allocation4], 256
    $region41: #{tpu_custom_call.1} parent=1 // pred_fallthru
      _
    %276 = vsyncpa [#allocation3], 1
    %277 = vsyncpa [#allocation6], 1
    %278 = vsyncpa [#allocation4], 1

</llo_original>
